<compile_context>
chip_gen: v6e
topology: v6e:2x2x1
jax: 0.10.0
libtpu: 0.0.40
codegen_flags: <defaults>
</compile_context>

<pallas_src>
import jax
import jax.numpy as jnp
from jax.experimental import pallas as pl
from jax.experimental.pallas import tpu as pltpu

LANE = 128  # TPU lane width


def _round_up(n: int, m: int) -> int:
    return (n + m - 1) // m * m


def _min_sublane(dtype) -> int:
    # Sub-32-bit dtypes pack along sublanes: f32 -> 8, bf16 -> 16, int8/fp8 -> 32.
    return 8 * (4 // jnp.dtype(dtype).itemsize)


def head_kernel(x_ref, w_ref, b_ref, o_ref):
    # MXU matmul with f32 accumulation; f32 bias add on the accumulator,
    # single cast to the output dtype at the end.
    acc = jnp.dot(x_ref[...], w_ref[...], preferred_element_type=jnp.float32)
    o_ref[...] = (acc + b_ref[...]).astype(o_ref.dtype)


def prepare_head_params(weight, bias=None, *, param_dtype=None):
    """One-time parameter prep (hoist out of the per-step forward path).

    weight: (d_out, d_in) in PyTorch nn.Linear layout.
    bias:   (d_out,) or None.
    Returns (w_p, b_p, d_out):
      w_p: (d_in, d_out_p) in `param_dtype`, lane-dense (d_out_p = round_up(d_out, 128))
      b_p: (1, d_out_p) float32
    """
    d_out, d_in = weight.shape
    d_out_p = _round_up(d_out, LANE)
    if param_dtype is None:
        param_dtype = weight.dtype
    w_p = weight.T.astype(param_dtype)                       # (d_in, d_out)
    if d_out_p != d_out:
        w_p = jnp.pad(w_p, ((0, 0), (0, d_out_p - d_out)))
    if bias is None:
        b_p = jnp.zeros((1, d_out_p), jnp.float32)
    else:
        b_p = bias.astype(jnp.float32).reshape(1, d_out)
        if d_out_p != d_out:
            b_p = jnp.pad(b_p, ((0, 0), (0, d_out_p - d_out)))
    return w_p, b_p, d_out


def _head_call(x, w_p, b_p, tb, n_tiles, *, single_buffer_params,
               vmem_limit_bytes, cost):
    B, d_in = x.shape
    d_out_p = w_p.shape[1]
    # Constant-index weight/bias never change blocks -> one buffer is enough.
    param_mode = {"pipeline_mode": pl.Buffered(1)} if single_buffer_params else {}
    cp_kwargs = dict(dimension_semantics=("parallel",))  # row tiles -> both TCs (v7x)
    if vmem_limit_bytes is not None:
        cp_kwargs["vmem_limit_bytes"] = vmem_limit_bytes
    return pl.pallas_call(
        head_kernel,
        out_shape=jax.ShapeDtypeStruct((B, d_out_p), x.dtype),
        grid_spec=pltpu.PrefetchScalarGridSpec(
            num_scalar_prefetch=0,
            grid=(n_tiles,),
            in_specs=[
                # x row-tiles stream (double-buffered by the pipeline)
                pl.BlockSpec((tb, d_in), lambda i: (i, 0)),
                # weight / bias: constant index_map -> VMEM-resident
                pl.BlockSpec((d_in, d_out_p), lambda i: (0, 0), **param_mode),
                pl.BlockSpec((1, d_out_p), lambda i: (0, 0), **param_mode),
            ],
            out_specs=pl.BlockSpec((tb, d_out_p), lambda i: (i, 0)),
        ),
        compiler_params=pltpu.CompilerParams(**cp_kwargs),
        cost_estimate=cost,
    )(x, w_p, b_p)


def head_forward(x, w_p, b_p, d_out=None, *, block_b: int = 1024):
    """y = x @ W^T + b with params pre-prepped by prepare_head_params().

    x:   (B, d_in)
    w_p: (d_in, d_out_p)  lane-dense weight (d_out_p multiple of 128)
    b_p: (1, d_out_p)     float32 bias row
    Returns (B, d_out) (padding sliced only if it exists).
    """
    B, d_in = x.shape
    d_out_p = w_p.shape[1]
    dtype = x.dtype
    itemsize = jnp.dtype(dtype).itemsize
    w_itemsize = jnp.dtype(w_p.dtype).itemsize
    sub = _min_sublane(dtype)

    # Batch tile: dtype-aware sublane multiple.  1024-row default tiles keep
    # the ~0.35us/step grid overhead negligible on v5e/v6e; shrink for tiny
    # batches, and split a single covering tile in two so v7x megacore
    # sharding of the "parallel" axis has work for both TensorCores.
    tb = min(block_b, _round_up(B, sub))
    if B <= tb and B >= 2 * sub:
        tb = _round_up(pl.cdiv(B, 2), sub)
    n_tiles = pl.cdiv(B, tb)  # ragged last tile handled by the block machinery

    # Scoped-VMEM need: 2x streamed x tile + 2x streamed out tile + resident
    # weight (single buffer) + f32 bias.  Only raise the limit when the
    # default scoped VMEM (16 MiB v5e / 32 MiB v6e, v7x) would be too small.
    vmem_need = (2 * tb * d_in * itemsize
                 + 2 * tb * d_out_p * itemsize
                 + d_in * d_out_p * w_itemsize
                 + d_out_p * 4)
    vmem_limit = None
    if vmem_need > 12 * 1024 * 1024:
        vmem_limit = min(int(vmem_need * 3 // 2), 64 * 1024 * 1024)

    cost = pl.CostEstimate(
        flops=2 * B * d_in * d_out_p,
        transcendentals=0,
        bytes_accessed=(B * d_in * itemsize
                        + d_in * d_out_p * w_itemsize
                        + d_out_p * 4
                        + B * d_out_p * itemsize),
    )

    try:
        out = _head_call(x, w_p, b_p, tb, n_tiles,
                         single_buffer_params=True,
                         vmem_limit_bytes=vmem_limit, cost=cost)
    except Exception:
        # Fallback for jax/Mosaic builds without pipeline_mode support on
        # top-level BlockSpecs: default (double-buffered) resident params.
        out = _head_call(x, w_p, b_p, tb, n_tiles,
                         single_buffer_params=False,
                         vmem_limit_bytes=vmem_limit, cost=cost)

    if d_out is not None and d_out != d_out_p:
        out = out[:, :d_out]  # strip lane padding only when it exists
    return out


def head_apply(x, weight, bias=None, *, block_b: int = 1024):
    """Convenience wrapper taking PyTorch-layout params.  Prefer calling
    prepare_head_params() once and head_forward() per step."""
    # bf16 activations/weights (with f32 accumulation + f32 bias) halve the
    # streamed bytes in this HBM-bound kernel when model precision allows.
    w_p, b_p, d_out = prepare_head_params(weight, bias, param_dtype=x.dtype)
    return head_forward(x, w_p, b_p, d_out, block_b=block_b)


if __name__ == "__main__":
    # Small shapes implied by the module: Head over per-example CLS features.
    batch, d_in, d_out = 8, 32, 16

    key = jax.random.PRNGKey(0)
    kx, kw, kb = jax.random.split(key, 3)

    # Deterministic init matching nn.Linear's uniform(-1/sqrt(d_in), 1/sqrt(d_in)).
    bound = 1.0 / (d_in ** 0.5)
    W = jax.random.uniform(kw, (d_out, d_in), jnp.float32, -bound, bound)
    b = jax.random.uniform(kb, (d_out,), jnp.float32, -bound, bound)
    x = jax.random.normal(kx, (batch, d_in), jnp.float32)

    # One-time parameter prep (hoisted out of the per-step forward path).
    w_p, b_p, d_out_real = prepare_head_params(W, b, param_dtype=x.dtype)

    y = head_forward(x, w_p, b_p, d_out_real)
    y = jax.block_until_ready(y)

    # Reference check against plain JAX (same math as nn.Linear).
    y_ref = x @ W.T + b
    assert y.shape == (batch, d_out)
    assert jnp.allclose(y, y_ref, atol=1e-5, rtol=1e-5)

    print("KERNEL_OK")
</pallas_src>

<mosaic_0001>
module attributes {stable_mosaic.version = 11 : i64} {
  func.func @head_kernel(%arg0: i32, %arg1: memref<8x32xf32, #tpu.memory_space<vmem>>, %arg2: memref<32x128xf32, #tpu.memory_space<vmem>>, %arg3: memref<1x128xf32, #tpu.memory_space<vmem>>, %arg4: memref<8x128xf32, #tpu.memory_space<vmem>>) attributes {dimension_semantics = [#tpu.dimension_semantics<parallel>], iteration_bounds = array<i64: 1>, scalar_prefetch = 0 : i64, scratch_operands = 0 : i64, tpu.core_type = #tpu.core_type<tc>, window_params = [{transform_indices = @transform_0, window_bounds = array<i64: 8, 32>}, {pipeline_mode = #tpu.pipeline_mode<synchronous>, transform_indices = @transform_1, window_bounds = array<i64: 32, 128>}, {pipeline_mode = #tpu.pipeline_mode<synchronous>, transform_indices = @transform_2, window_bounds = array<i64: 1, 128>}, {transform_indices = @transform_3, window_bounds = array<i64: 8, 128>}]} {
    %c0 = arith.constant 0 : index
    %c0_0 = arith.constant 0 : index
    %0 = vector.load %arg1[%c0, %c0_0] : memref<8x32xf32, #tpu.memory_space<vmem>>, vector<8x32xf32>
    %c0_1 = arith.constant 0 : index
    %c0_2 = arith.constant 0 : index
    %1 = vector.load %arg2[%c0_1, %c0_2] : memref<32x128xf32, #tpu.memory_space<vmem>>, vector<32x128xf32>
    %cst = arith.constant dense<0.000000e+00> : vector<8x128xf32>
    %2 = tpu.matmul %0, %1, %cst {dimension_numbers = #tpu.dot_dimension_numbers<[1], [0], [0], [1], [0, 0, 1, 1], [], []>} : vector<8x32xf32>, vector<32x128xf32>, vector<8x128xf32> -> vector<8x128xf32>
    %c0_3 = arith.constant 0 : index
    %c0_4 = arith.constant 0 : index
    %3 = vector.load %arg3[%c0_3, %c0_4] : memref<1x128xf32, #tpu.memory_space<vmem>>, vector<1x128xf32>
    %4 = vector.broadcast %3 : vector<1x128xf32> to vector<8x128xf32>
    %5 = arith.addf %2, %4 : vector<8x128xf32>
    %c0_5 = arith.constant 0 : index
    %c0_6 = arith.constant 0 : index
    %6 = vector.load %arg4[%c0_5, %c0_6] : memref<8x128xf32, #tpu.memory_space<vmem>>, vector<8x128xf32>
    tpu.vector_store %arg4[%c0_5, %c0_6], %5 {strides = array<i32>} : memref<8x128xf32, #tpu.memory_space<vmem>>, vector<8x128xf32>,
    return
  }
  func.func @transform_0(%arg0: i32) -> (i32, i32) {
    %c0_i32 = arith.constant 0 : i32
    %c0_i32_0 = arith.constant 0 : i32
    return %arg0, %c0_i32 : i32, i32
  }
  func.func @transform_1(%arg0: i32) -> (i32, i32) {
    %c0_i32 = arith.constant 0 : i32
    %c0_i32_0 = arith.constant 0 : i32
    %c0_i32_1 = arith.constant 0 : i32
    return %c0_i32, %c0_i32_0 : i32, i32
  }
  func.func @transform_2(%arg0: i32) -> (i32, i32) {
    %c0_i32 = arith.constant 0 : i32
    %c0_i32_0 = arith.constant 0 : i32
    %c0_i32_1 = arith.constant 0 : i32
    return %c0_i32, %c0_i32_0 : i32, i32
  }
  func.func @transform_3(%arg0: i32) -> (i32, i32) {
    %c0_i32 = arith.constant 0 : i32
    %c0_i32_0 = arith.constant 0 : i32
    return %arg0, %c0_i32 : i32, i32
  }
}

module attributes {stable_mosaic.version = 11 : i64} {
  func.func @head_kernel(%arg0: i32, %arg1: memref<8x32xf32, #tpu.memory_space<vmem>>, %arg2: memref<32x128xf32, #tpu.memory_space<vmem>>, %arg3: memref<1x128xf32, #tpu.memory_space<vmem>>, %arg4: memref<8x128xf32, #tpu.memory_space<vmem>>) attributes {dimension_semantics = [#tpu.dimension_semantics<parallel>], iteration_bounds = array<i64: 1>, scalar_prefetch = 0 : i64, scratch_operands = 0 : i64, tpu.core_type = #tpu.core_type<tc>, window_params = [{transform_indices = @transform_0, window_bounds = array<i64: 8, 32>}, {pipeline_mode = #tpu.pipeline_mode<synchronous>, transform_indices = @transform_1, window_bounds = array<i64: 32, 128>}, {pipeline_mode = #tpu.pipeline_mode<synchronous>, transform_indices = @transform_2, window_bounds = array<i64: 1, 128>}, {transform_indices = @transform_3, window_bounds = array<i64: 8, 128>}]} {
    %c0 = arith.constant 0 : index
    %c0_0 = arith.constant 0 : index
    %0 = vector.load %arg1[%c0, %c0_0] : memref<8x32xf32, #tpu.memory_space<vmem>>, vector<8x32xf32>
    %c0_1 = arith.constant 0 : index
    %c0_2 = arith.constant 0 : index
    %1 = vector.load %arg2[%c0_1, %c0_2] : memref<32x128xf32, #tpu.memory_space<vmem>>, vector<32x128xf32>
    %cst = arith.constant dense<0.000000e+00> : vector<8x128xf32>
    %2 = tpu.matmul %0, %1, %cst {dimension_numbers = #tpu.dot_dimension_numbers<[1], [0], [0], [1], [0, 0, 1, 1], [], []>} : vector<8x32xf32>, vector<32x128xf32>, vector<8x128xf32> -> vector<8x128xf32>
    %c0_3 = arith.constant 0 : index
    %c0_4 = arith.constant 0 : index
    %3 = vector.load %arg3[%c0_3, %c0_4] : memref<1x128xf32, #tpu.memory_space<vmem>>, vector<1x128xf32>
    %4 = vector.broadcast %3 : vector<1x128xf32> to vector<8x128xf32>
    %5 = arith.addf %2, %4 : vector<8x128xf32>
    %c0_5 = arith.constant 0 : index
    %c0_6 = arith.constant 0 : index
    %6 = vector.load %arg4[%c0_5, %c0_6] : memref<8x128xf32, #tpu.memory_space<vmem>>, vector<8x128xf32>
    tpu.vector_store %arg4[%c0_5, %c0_6], %5 {strides = array<i32>} : memref<8x128xf32, #tpu.memory_space<vmem>>, vector<8x128xf32>,
    return
  }
  func.func @transform_0(%arg0: i32) -> (i32, i32) {
    %c0_i32 = arith.constant 0 : i32
    %c0_i32_0 = arith.constant 0 : i32
    return %arg0, %c0_i32 : i32, i32
  }
  func.func @transform_1(%arg0: i32) -> (i32, i32) {
    %c0_i32 = arith.constant 0 : i32
    %c0_i32_0 = arith.constant 0 : i32
    %c0_i32_1 = arith.constant 0 : i32
    return %c0_i32, %c0_i32_0 : i32, i32
  }
  func.func @transform_2(%arg0: i32) -> (i32, i32) {
    %c0_i32 = arith.constant 0 : i32
    %c0_i32_0 = arith.constant 0 : i32
    %c0_i32_1 = arith.constant 0 : i32
    return %c0_i32, %c0_i32_0 : i32, i32
  }
  func.func @transform_3(%arg0: i32) -> (i32, i32) {
    %c0_i32 = arith.constant 0 : i32
    %c0_i32_0 = arith.constant 0 : i32
    return %arg0, %c0_i32 : i32, i32
  }
}

</mosaic_0001>

<llo_original>
// kernel: tpu_custom_call.1
$region0: #{tpu_custom_call.1}
  #allocation0 [shape = 'u32[]', space=smem, size = 0x4, offset = 0x4, fixed_abs, tag = 'smem constant byte address 0x4 - core index']
  #allocation1 [shape = 'u32[144,128]{1,0:T(1,128)}', space=vmem, size = 0x12000, scoped, tag = 'internal scratch']
  %s0 = inlined_call_operand.hbm [shape: f32[8,32], index: 0, kind: input, shape index: {}]
  %s1 = inlined_call_operand.hbm [shape: f32[32,128], index: 1, kind: input, shape index: {}]
  %s2 = inlined_call_operand.vmem [shape: f32[1,128], index: 2, kind: input, shape index: {}]
  %s3 = inlined_call_operand.hbm [shape: f32[8,128], index: 3, kind: output, shape index: {}]
  %s4 = sld [smem:[#allocation0]]
  $region30: #{tpu_custom_call.1} parent=0
    _
  %s6 = ssub.s32 1, %s4
  %s7 = scalar_select 0, %s6, %s4
  $region1: #{tpu_custom_call.1} parent=0
    #allocation2 [shape = 'u8[4096]{0}', space=vmem, size = 0x1000, scoped, tag = 'input window, operand 0, single buffered']
    #allocation3 [shape = 's32[1]{0}', space=sflag, size = 0x4, scoped, tag = 'scoped memory for tpu_custom_call.1']
    #allocation4 [shape = 's32[1]{0}', space=sflag, size = 0x4, scoped, tag = 'scoped memory for tpu_custom_call.1']
    #allocation5 [shape = 'u8[16384]{0}', space=vmem, size = 0x4000, scoped, tag = 'input window, operand 1, single buffered']
    #allocation6 [shape = 's32[1]{0}', space=sflag, size = 0x4, scoped, tag = 'scoped memory for tpu_custom_call.1']
    #allocation7 [shape = 'u8[4096]{0}', space=vmem, size = 0x1000, scoped, tag = 'output window, operand 0, single buffered']
    %8 = vsyncpa [#allocation3], 0
    %9 = vsyncpa [#allocation6], 0
    %10 = vsyncpa [#allocation4], 0
    // Predicated region
    $region2: #{tpu_custom_call.1} parent=1 // pred_check
      _
    $region3: #{tpu_custom_call.1} parent=1 // pred_check_branch
      %12 = sbr.rel (0) target = $region5
    $region4: #{tpu_custom_call.1} parent=1 // pred_region
      %s14 = ssub.s32 128, 128
      %15 = vsyncadd [#allocation3], %s14
      %s17 = sshll.u32 [#allocation2], 4
      %s18 = int_to_ptr.vmem [resolvable:$true] %s17
      %20 = dma.hbm_to_vmem [thread:$0]  %s0, 128, %s18, [#allocation3]
    $region5: #{tpu_custom_call.1} parent=1 // pred_fallthru
      _
    // Predicated region
    $region6: #{tpu_custom_call.1} parent=1 // pred_check
      _
    $region7: #{tpu_custom_call.1} parent=1 // pred_check_branch
      %22 = sbr.rel (0) target = $region9
    $region8: #{tpu_custom_call.1} parent=1 // pred_region
      %s24 = ssub.s32 512, 512
      %25 = vsyncadd [#allocation6], %s24
      %s26 = sshll.u32 [#allocation5], 4
      %s27 = int_to_ptr.vmem [resolvable:$true] %s26
      %32 = dma.hbm_to_vmem [thread:$0]  %s1, 512, %s27, [#allocation6], 128, 128, 8
    $region9: #{tpu_custom_call.1} parent=1 // pred_fallthru
      _
    // Predicated region
    $region10: #{tpu_custom_call.1} parent=1 // pred_check
      _
    $region11: #{tpu_custom_call.1} parent=1 // pred_check_branch
      %34 = sbr.rel (0) target = $region13
    $region12: #{tpu_custom_call.1} parent=1 // pred_region
      _
    $region13: #{tpu_custom_call.1} parent=1 // pred_fallthru
      _
    // Predicated region
    $region14: #{tpu_custom_call.1} parent=1 // pred_check
      _
    $region15: #{tpu_custom_call.1} parent=1 // pred_check_branch
      %36 = sbr.rel (0) target = $region17
    $region16: #{tpu_custom_call.1} parent=1 // pred_region
      %37 = dma.done [#allocation3], 128
    $region17: #{tpu_custom_call.1} parent=1 // pred_fallthru
      _
    // Predicated region
    $region18: #{tpu_custom_call.1} parent=1 // pred_check
      _
    $region19: #{tpu_custom_call.1} parent=1 // pred_check_branch
      %39 = sbr.rel (0) target = $region21
    $region20: #{tpu_custom_call.1} parent=1 // pred_region
      %40 = dma.done [#allocation6], 512
    $region21: #{tpu_custom_call.1} parent=1 // pred_fallthru
      _
    %v41 = vld [vmem:[#allocation2] sm:$0xff]
    %v42 = vld [vmem:[#allocation5] sm:$0xff]
    %v43 = vld [vmem:[#allocation5 + $0x8] sm:$0xff]
    %v44 = vld [vmem:[#allocation5 + $0x10] sm:$0xff]
    %v45 = vld [vmem:[#allocation5 + $0x18] sm:$0xff]
    %v46 = vld [vmem:[%s2] sm:$0x1]
    %v48 = vlaneseq
    %v49 = vshrl.u32 %v48, 7
    %v50 = vsub.s32 0, %v49
    %v51 = vrot.slane %v46, %v50
    %vm53 = vcmask 261120
    %v55 = vsel %vm53, %v41, 0
    %57 = vmatprep.subr.mxu0 0.0
    %58 = vmatpush1.msra.mxu0 0.0
    %59 = vmatprep.subr.mxu0 0.0
    %60 = vmatpush1.msra.mxu0 0.0
    %61 = vmatprep.subr.mxu0 0.0
    %62 = vmatpush1.msra.mxu0 0.0
    %63 = vmatprep.subr.mxu0 0.0
    %64 = vmatpush1.msra.mxu0 0.0
    %65 = vmatprep.subr.mxu0 0.0
    %66 = vmatpush1.msra.mxu0 0.0
    %67 = vmatprep.subr.mxu0 0.0
    %68 = vmatpush1.msra.mxu0 0.0
    %69 = vmatprep.subr.mxu0 0.0
    %70 = vmatpush1.msra.mxu0 0.0
    %71 = vmatprep.subr.mxu0 0.0
    %72 = vmatpush1.msra.mxu0 0.0
    %73 = vmatprep.subr.mxu0 0.0
    %74 = vmatpush1.msra.mxu0 0.0
    %75 = vmatprep.subr.mxu0 0.0
    %76 = vmatpush1.msra.mxu0 0.0
    %77 = vmatprep.subr.mxu0 0.0
    %78 = vmatpush1.msra.mxu0 0.0
    %79 = vmatprep.subr.mxu0 0.0
    %80 = vmatpush1.msra.mxu0 0.0
    %81 = vmatprep.subr.mxu0 0.0
    %82 = vmatpush1.msra.mxu0 %v45
    %83 = vmatprep.subr.mxu0 0.0
    %84 = vmatpush1.msra.mxu0 %v44
    %85 = vmatprep.subr.mxu0 0.0
    %86 = vmatpush1.msra.mxu0 %v43
    %87 = vmatprep.subr.mxu0 0.0
    %88 = vmatpush1.msra.mxu0 %v42
    %89 = vmatprep.subr.mxu0 0.0
    %90 = vmatpush2.msra.mxu0 0.0
    %91 = vmatprep.subr.mxu0 0.0
    %92 = vmatpush2.msra.mxu0 0.0
    %93 = vmatprep.subr.mxu0 0.0
    %94 = vmatpush2.msra.mxu0 0.0
    %95 = vmatprep.subr.mxu0 0.0
    %96 = vmatpush2.msra.mxu0 0.0
    %97 = vmatprep.subr.mxu0 0.0
    %98 = vmatpush2.msra.mxu0 0.0
    %99 = vmatprep.subr.mxu0 0.0
    %100 = vmatpush2.msra.mxu0 0.0
    %101 = vmatprep.subr.mxu0 0.0
    %102 = vmatpush2.msra.mxu0 0.0
    %103 = vmatprep.subr.mxu0 0.0
    %104 = vmatpush2.msra.mxu0 0.0
    %105 = vmatprep.subr.mxu0 0.0
    %106 = vmatpush2.msra.mxu0 0.0
    %107 = vmatprep.subr.mxu0 0.0
    %108 = vmatpush2.msra.mxu0 0.0
    %109 = vmatprep.subr.mxu0 0.0
    %110 = vmatpush2.msra.mxu0 0.0
    %111 = vmatprep.subr.mxu0 0.0
    %112 = vmatpush2.msra.mxu0 0.0
    %113 = vmatprep.subr.mxu0 0.0
    %114 = vmatpush2.msra.mxu0 0.0
    %115 = vmatprep.subr.mxu0 0.0
    %116 = vmatpush2.msra.mxu0 0.0
    %117 = vmatprep.subr.mxu0 0.0
    %118 = vmatpush2.msra.mxu0 0.0
    %119 = vmatprep.subr.mxu0 0.0
    %120 = vmatpush2.msra.mxu0 0.0
    %121 = vmatprep.mubr.f32.mxu0 0.0
    %122 = vmatmul.mubr.f32.gmra.mxu0 %v55
    %v123 = vpop.f32.mrf.mxu0
    %v124 = vadd.f32 %v51, %v123
    %v125 = vpop.f32.mrf.mxu0
    %126 = vdwg.mxu0
    %127 = vst [vmem:[#allocation7] sm:$0xff] %v124
    // Predicated region
    $region22: #{tpu_custom_call.1} parent=1 // pred_check
      _
    $region23: #{tpu_custom_call.1} parent=1 // pred_check_branch
      %129 = sbr.rel (0) target = $region25
    $region24: #{tpu_custom_call.1} parent=1 // pred_region
      %s131 = ssub.s32 128, 128
      %132 = vsyncadd [#allocation4], %s131
      %s134 = sshll.u32 [#allocation7], 4
      %s135 = int_to_ptr.vmem [resolvable:$true] %s134
      %137 = dma.vmem_to_hbm [thread:$0]  %s135, 128, %s3, [#allocation4]
    $region25: #{tpu_custom_call.1} parent=1 // pred_fallthru
      _
    // Predicated region
    $region26: #{tpu_custom_call.1} parent=1 // pred_check
      _
    $region27: #{tpu_custom_call.1} parent=1 // pred_check_branch
      %139 = sbr.rel (0) target = $region29
    $region28: #{tpu_custom_call.1} parent=1 // pred_region
      %140 = dma.done [#allocation4], 128
    $region29: #{tpu_custom_call.1} parent=1 // pred_fallthru
      _
    %141 = vsyncpa [#allocation3], 1
    %142 = vsyncpa [#allocation6], 1
    %143 = vsyncpa [#allocation4], 1

// kernel: tpu_custom_call.1
$region0: #{tpu_custom_call.1}
  #allocation0 [shape = 'u32[]', space=smem, size = 0x4, offset = 0x4, fixed_abs, tag = 'smem constant byte address 0x4 - core index']
  #allocation1 [shape = 'u32[144,128]{1,0:T(1,128)}', space=vmem, size = 0x12000, scoped, tag = 'internal scratch']
  %s0 = inlined_call_operand.hbm [shape: f32[8,32], index: 0, kind: input, shape index: {}]
  %s1 = inlined_call_operand.hbm [shape: f32[32,128], index: 1, kind: input, shape index: {}]
  %s2 = inlined_call_operand.vmem [shape: f32[1,128], index: 2, kind: input, shape index: {}]
  %s3 = inlined_call_operand.hbm [shape: f32[8,128], index: 3, kind: output, shape index: {}]
  %s4 = sld [smem:[#allocation0]]
  $region30: #{tpu_custom_call.1} parent=0
    _
  %s6 = ssub.s32 1, %s4
  %s7 = scalar_select 0, %s6, %s4
  $region1: #{tpu_custom_call.1} parent=0
    #allocation2 [shape = 'u8[4096]{0}', space=vmem, size = 0x1000, scoped, tag = 'input window, operand 0, single buffered']
    #allocation3 [shape = 's32[1]{0}', space=sflag, size = 0x4, scoped, tag = 'scoped memory for tpu_custom_call.1']
    #allocation4 [shape = 's32[1]{0}', space=sflag, size = 0x4, scoped, tag = 'scoped memory for tpu_custom_call.1']
    #allocation5 [shape = 'u8[16384]{0}', space=vmem, size = 0x4000, scoped, tag = 'input window, operand 1, single buffered']
    #allocation6 [shape = 's32[1]{0}', space=sflag, size = 0x4, scoped, tag = 'scoped memory for tpu_custom_call.1']
    #allocation7 [shape = 'u8[4096]{0}', space=vmem, size = 0x1000, scoped, tag = 'output window, operand 0, single buffered']
    %8 = vsyncpa [#allocation3], 0
    %9 = vsyncpa [#allocation6], 0
    %10 = vsyncpa [#allocation4], 0
    // Predicated region
    $region2: #{tpu_custom_call.1} parent=1 // pred_check
      _
    $region3: #{tpu_custom_call.1} parent=1 // pred_check_branch
      %12 = sbr.rel (0) target = $region5
    $region4: #{tpu_custom_call.1} parent=1 // pred_region
      %s14 = ssub.s32 128, 128
      %15 = vsyncadd [#allocation3], %s14
      %s17 = sshll.u32 [#allocation2], 4
      %s18 = int_to_ptr.vmem [resolvable:$true] %s17
      %20 = dma.hbm_to_vmem [thread:$0]  %s0, 128, %s18, [#allocation3]
    $region5: #{tpu_custom_call.1} parent=1 // pred_fallthru
      _
    // Predicated region
    $region6: #{tpu_custom_call.1} parent=1 // pred_check
      _
    $region7: #{tpu_custom_call.1} parent=1 // pred_check_branch
      %22 = sbr.rel (0) target = $region9
    $region8: #{tpu_custom_call.1} parent=1 // pred_region
      %s24 = ssub.s32 512, 512
      %25 = vsyncadd [#allocation6], %s24
      %s26 = sshll.u32 [#allocation5], 4
      %s27 = int_to_ptr.vmem [resolvable:$true] %s26
      %32 = dma.hbm_to_vmem [thread:$0]  %s1, 512, %s27, [#allocation6], 128, 128, 8
    $region9: #{tpu_custom_call.1} parent=1 // pred_fallthru
      _
    // Predicated region
    $region10: #{tpu_custom_call.1} parent=1 // pred_check
      _
    $region11: #{tpu_custom_call.1} parent=1 // pred_check_branch
      %34 = sbr.rel (0) target = $region13
    $region12: #{tpu_custom_call.1} parent=1 // pred_region
      _
    $region13: #{tpu_custom_call.1} parent=1 // pred_fallthru
      _
    // Predicated region
    $region14: #{tpu_custom_call.1} parent=1 // pred_check
      _
    $region15: #{tpu_custom_call.1} parent=1 // pred_check_branch
      %36 = sbr.rel (0) target = $region17
    $region16: #{tpu_custom_call.1} parent=1 // pred_region
      %37 = dma.done [#allocation3], 128
    $region17: #{tpu_custom_call.1} parent=1 // pred_fallthru
      _
    // Predicated region
    $region18: #{tpu_custom_call.1} parent=1 // pred_check
      _
    $region19: #{tpu_custom_call.1} parent=1 // pred_check_branch
      %39 = sbr.rel (0) target = $region21
    $region20: #{tpu_custom_call.1} parent=1 // pred_region
      %40 = dma.done [#allocation6], 512
    $region21: #{tpu_custom_call.1} parent=1 // pred_fallthru
      _
    %v41 = vld [vmem:[#allocation2] sm:$0xff]
    %v42 = vld [vmem:[#allocation5] sm:$0xff]
    %v43 = vld [vmem:[#allocation5 + $0x8] sm:$0xff]
    %v44 = vld [vmem:[#allocation5 + $0x10] sm:$0xff]
    %v45 = vld [vmem:[#allocation5 + $0x18] sm:$0xff]
    %v46 = vld [vmem:[%s2] sm:$0x1]
    %v48 = vlaneseq
    %v49 = vshrl.u32 %v48, 7
    %v50 = vsub.s32 0, %v49
    %v51 = vrot.slane %v46, %v50
    %vm53 = vcmask 261120
    %v55 = vsel %vm53, %v41, 0
    %57 = vmatprep.subr.mxu0 0.0
    %58 = vmatpush1.msra.mxu0 0.0
    %59 = vmatprep.subr.mxu0 0.0
    %60 = vmatpush1.msra.mxu0 0.0
    %61 = vmatprep.subr.mxu0 0.0
    %62 = vmatpush1.msra.mxu0 0.0
    %63 = vmatprep.subr.mxu0 0.0
    %64 = vmatpush1.msra.mxu0 0.0
    %65 = vmatprep.subr.mxu0 0.0
    %66 = vmatpush1.msra.mxu0 0.0
    %67 = vmatprep.subr.mxu0 0.0
    %68 = vmatpush1.msra.mxu0 0.0
    %69 = vmatprep.subr.mxu0 0.0
    %70 = vmatpush1.msra.mxu0 0.0
    %71 = vmatprep.subr.mxu0 0.0
    %72 = vmatpush1.msra.mxu0 0.0
    %73 = vmatprep.subr.mxu0 0.0
    %74 = vmatpush1.msra.mxu0 0.0
    %75 = vmatprep.subr.mxu0 0.0
    %76 = vmatpush1.msra.mxu0 0.0
    %77 = vmatprep.subr.mxu0 0.0
    %78 = vmatpush1.msra.mxu0 0.0
    %79 = vmatprep.subr.mxu0 0.0
    %80 = vmatpush1.msra.mxu0 0.0
    %81 = vmatprep.subr.mxu0 0.0
    %82 = vmatpush1.msra.mxu0 %v45
    %83 = vmatprep.subr.mxu0 0.0
    %84 = vmatpush1.msra.mxu0 %v44
    %85 = vmatprep.subr.mxu0 0.0
    %86 = vmatpush1.msra.mxu0 %v43
    %87 = vmatprep.subr.mxu0 0.0
    %88 = vmatpush1.msra.mxu0 %v42
    %89 = vmatprep.subr.mxu0 0.0
    %90 = vmatpush2.msra.mxu0 0.0
    %91 = vmatprep.subr.mxu0 0.0
    %92 = vmatpush2.msra.mxu0 0.0
    %93 = vmatprep.subr.mxu0 0.0
    %94 = vmatpush2.msra.mxu0 0.0
    %95 = vmatprep.subr.mxu0 0.0
    %96 = vmatpush2.msra.mxu0 0.0
    %97 = vmatprep.subr.mxu0 0.0
    %98 = vmatpush2.msra.mxu0 0.0
    %99 = vmatprep.subr.mxu0 0.0
    %100 = vmatpush2.msra.mxu0 0.0
    %101 = vmatprep.subr.mxu0 0.0
    %102 = vmatpush2.msra.mxu0 0.0
    %103 = vmatprep.subr.mxu0 0.0
    %104 = vmatpush2.msra.mxu0 0.0
    %105 = vmatprep.subr.mxu0 0.0
    %106 = vmatpush2.msra.mxu0 0.0
    %107 = vmatprep.subr.mxu0 0.0
    %108 = vmatpush2.msra.mxu0 0.0
    %109 = vmatprep.subr.mxu0 0.0
    %110 = vmatpush2.msra.mxu0 0.0
    %111 = vmatprep.subr.mxu0 0.0
    %112 = vmatpush2.msra.mxu0 0.0
    %113 = vmatprep.subr.mxu0 0.0
    %114 = vmatpush2.msra.mxu0 0.0
    %115 = vmatprep.subr.mxu0 0.0
    %116 = vmatpush2.msra.mxu0 0.0
    %117 = vmatprep.subr.mxu0 0.0
    %118 = vmatpush2.msra.mxu0 0.0
    %119 = vmatprep.subr.mxu0 0.0
    %120 = vmatpush2.msra.mxu0 0.0
    %121 = vmatprep.mubr.f32.mxu0 0.0
    %122 = vmatmul.mubr.f32.gmra.mxu0 %v55
    %v123 = vpop.f32.mrf.mxu0
    %v124 = vadd.f32 %v51, %v123
    %v125 = vpop.f32.mrf.mxu0
    %126 = vdwg.mxu0
    %127 = vst [vmem:[#allocation7] sm:$0xff] %v124
    // Predicated region
    $region22: #{tpu_custom_call.1} parent=1 // pred_check
      _
    $region23: #{tpu_custom_call.1} parent=1 // pred_check_branch
      %129 = sbr.rel (0) target = $region25
    $region24: #{tpu_custom_call.1} parent=1 // pred_region
      %s131 = ssub.s32 128, 128
      %132 = vsyncadd [#allocation4], %s131
      %s134 = sshll.u32 [#allocation7], 4
      %s135 = int_to_ptr.vmem [resolvable:$true] %s134
      %137 = dma.vmem_to_hbm [thread:$0]  %s135, 128, %s3, [#allocation4]
    $region25: #{tpu_custom_call.1} parent=1 // pred_fallthru
      _
    // Predicated region
    $region26: #{tpu_custom_call.1} parent=1 // pred_check
      _
    $region27: #{tpu_custom_call.1} parent=1 // pred_check_branch
      %139 = sbr.rel (0) target = $region29
    $region28: #{tpu_custom_call.1} parent=1 // pred_region
      %140 = dma.done [#allocation4], 128
    $region29: #{tpu_custom_call.1} parent=1 // pred_fallthru
      _
    %141 = vsyncpa [#allocation3], 1
    %142 = vsyncpa [#allocation6], 1
    %143 = vsyncpa [#allocation4], 1

</llo_original>
